<compile_context>
chip_gen: v7x
topology: tpu7x:2x2x1
jax: 0.10.0
libtpu: 0.0.40
codegen_flags: <defaults>
</compile_context>

<pallas_src>
import functools

import jax
import jax.numpy as jnp
from jax.experimental import pallas as pl
from jax.experimental.pallas import tpu as pltpu

# ---- default_compression_config ----
NUM_BITS = 8
GROUP_SIZE = 256
GROUP_DIM = 1
SYMMETRIC = True


def _round_up(x, m):
    return (x + m - 1) // m * m


def compress_weight(weight):
    """Plain-JAX parameter setup mirroring compress() for a (out, in) weight,
    group_dim=1, symmetric int8.  Returns (q_int8, scale, original_shape)."""
    out_f, in_f = weight.shape
    num_groups = (in_f + GROUP_SIZE - 1) // GROUP_SIZE
    pad_len = (GROUP_SIZE - in_f % GROUP_SIZE) % GROUP_SIZE
    if pad_len:
        weight = jnp.concatenate(
            [weight, jnp.zeros((out_f, pad_len), weight.dtype)], axis=1)
    data = weight.reshape(out_f, num_groups, GROUP_SIZE)
    B = 2 ** (NUM_BITS - 1) - 1
    amax = jnp.max(jnp.abs(data), axis=2, keepdims=True)          # (out, g, 1)
    # guard all-zero groups (e.g. a fully padded group): avoid inf scale / NaN q
    scale = jnp.where(amax == 0, 1.0, B / amax)
    q = jnp.clip(jnp.round(data * scale), -B, B).astype(jnp.int8)
    return q, scale, (out_f, in_f)


def clinear_kernel(x_ref, qw_ref, scale_ref, b_ref, o_ref, *, groups_per_step):
    """x_ref:(tm, gps*G) bf16, qw_ref:(gps*G, tn) int8, scale_ref:(gps,1,tn) f32,
    b_ref:(1, tn) f32, o_ref:(tm, tn) f32 (resident accumulator across K)."""
    k = pl.program_id(2)

    @pl.when(k == 0)
    def _():
        o_ref[...] = jnp.broadcast_to(b_ref[...], o_ref.shape)

    # in-kernel dequantization: decompress == q / scale.  scale is constant
    # within a group's K range, so apply it to the post-matmul partial sum.
    inv_scale = 1.0 / scale_ref[...]                       # (gps, 1, tn) -- tiny
    acc = jnp.zeros(o_ref.shape, jnp.float32)
    for g in range(groups_per_step):                        # static unroll
        lo = g * GROUP_SIZE
        xg = x_ref[:, lo:lo + GROUP_SIZE]                   # (tm, G) bf16
        qg = qw_ref[lo:lo + GROUP_SIZE, :].astype(jnp.bfloat16)   # (G, tn) bf16
        part = jnp.dot(xg, qg, preferred_element_type=jnp.float32)
        acc = acc + part * inv_scale[g]                     # (1, tn) broadcast
    o_ref[...] += acc


def clinear_forward(x, q, scale, bias, original_shape, *, tm=256, tn=512):
    """x: (..., in_features) float32.  q: (out, groups, G) int8.
    scale: (out, groups, 1) f32.  bias: (out,)."""
    out_f, in_f = original_shape
    *lead, K_in = x.shape
    assert K_in == in_f
    num_groups = q.shape[1]
    K_pad = num_groups * GROUP_SIZE
    M = 1
    for d in lead:
        M *= d

    # groups fused per grid step (K block of up to 1024)
    gps = next(g for g in (4, 2, 1) if num_groups % g == 0)
    tk = gps * GROUP_SIZE

    # tile sizes, padded dims (lane-dense, 128-aligned N; 8-aligned M)
    tm_eff = min(tm, _round_up(M, 8))
    M_pad = _round_up(M, tm_eff)
    tn_eff = min(tn, _round_up(out_f, 128))
    N_pad = _round_up(out_f, tn_eff)

    # ---- layout glue (no compute hoisted out of the kernel) ----
    x2d = x.reshape(M, in_f).astype(jnp.bfloat16)
    if K_pad != in_f:
        # padded weight columns dequantize to 0, so zero-padding x is exact
        x2d = jnp.pad(x2d, ((0, 0), (0, K_pad - in_f)))
    if M_pad != M:
        x2d = jnp.pad(x2d, ((0, M_pad - M), (0, 0)))

    qw_t = q.reshape(out_f, K_pad).T                        # (K_pad, out) int8
    if N_pad != out_f:
        qw_t = jnp.pad(qw_t, ((0, 0), (0, N_pad - out_f)))

    # scale: one f32 row per group, (num_groups, 1, N_pad); pad with 1.0
    scale_knl = jnp.transpose(scale, (1, 2, 0)).astype(jnp.float32)
    if N_pad != out_f:
        scale_knl = jnp.pad(scale_knl, ((0, 0), (0, 0), (0, N_pad - out_f)),
                            constant_values=1.0)

    bias2d = jnp.pad(bias.astype(jnp.float32), (0, N_pad - out_f)).reshape(1, N_pad)

    grid = (M_pad // tm_eff, N_pad // tn_eff, num_groups // gps)

    out2d = pl.pallas_call(
        functools.partial(clinear_kernel, groups_per_step=gps),
        out_shape=jax.ShapeDtypeStruct((M_pad, N_pad), jnp.float32),
        grid_spec=pltpu.PrefetchScalarGridSpec(
            num_scalar_prefetch=0,
            grid=grid,
            in_specs=[
                pl.BlockSpec((tm_eff, tk), lambda i, j, k: (i, k)),      # x (bf16)
                pl.BlockSpec((tk, tn_eff), lambda i, j, k: (k, j)),      # int8 weight
                pl.BlockSpec((gps, 1, tn_eff), lambda i, j, k: (k, 0, j)),  # per-group scale row
                pl.BlockSpec((1, tn_eff), lambda i, j, k: (0, j)),       # bias
            ],
            out_specs=pl.BlockSpec((tm_eff, tn_eff), lambda i, j, k: (i, j)),
        ),
        compiler_params=pltpu.CompilerParams(
            dimension_semantics=("parallel", "parallel", "arbitrary")),
    )(x2d, qw_t, scale_knl, bias2d)

    out = out2d[:M, :out_f].astype(x.dtype)
    return out.reshape(*lead, out_f)


if __name__ == "__main__":
    # small shapes: batch=2, seq=8, in_features=512 (2 groups of 256), out_features=128
    B_, S_, D_in, D_out = 2, 8, 512, 128

    key = jax.random.PRNGKey(0)
    k_w, k_b, k_x = jax.random.split(key, 3)
    weight = jax.random.normal(k_w, (D_out, D_in), jnp.float32) * 0.05
    bias = jax.random.normal(k_b, (D_out,), jnp.float32) * 0.1
    x = jax.random.normal(k_x, (B_, S_, D_in), jnp.float32)

    # CLinear.__init__: compress the weight (parameter setup, plain JAX)
    q, scale, orig_shape = compress_weight(weight)

    # CLinear.forward via Pallas kernel (dequant + matmul + bias in-kernel)
    out = clinear_forward(x, q, scale, bias, orig_shape)
    out = jax.block_until_ready(out)

    # pure-JAX reference of the same forward semantics
    w_deq = (q.astype(jnp.float32) / scale).reshape(D_out, -1)[:, :D_in]
    ref = jnp.einsum("bsk,nk->bsn", x, w_deq) + bias

    assert out.shape == (B_, S_, D_out)
    assert jnp.allclose(out, ref, rtol=1e-2, atol=1e-2), \
        f"max err {jnp.max(jnp.abs(out - ref))}"
    print("KERNEL_OK")
</pallas_src>

<mosaic_0001>
module attributes {stable_mosaic.version = 11 : i64} {
  func.func @clinear_kernel(%arg0: i32, %arg1: i32, %arg2: i32, %arg3: memref<16x512xbf16, #tpu.memory_space<vmem>>, %arg4: memref<512x128xi8, #tpu.memory_space<vmem>>, %arg5: memref<2x1x128xf32, #tpu.memory_space<vmem>>, %arg6: memref<1x128xf32, #tpu.memory_space<vmem>>, %arg7: memref<16x128xf32, #tpu.memory_space<vmem>>) attributes {dimension_semantics = [#tpu.dimension_semantics<parallel>, #tpu.dimension_semantics<parallel>, #tpu.dimension_semantics<arbitrary>], iteration_bounds = array<i64: 1, 1, 1>, scalar_prefetch = 0 : i64, scratch_operands = 0 : i64, tpu.core_type = #tpu.core_type<tc>, window_params = [{transform_indices = @transform_0, window_bounds = array<i64: 16, 512>}, {transform_indices = @transform_1, window_bounds = array<i64: 512, 128>}, {transform_indices = @transform_2, window_bounds = array<i64: 2, 1, 128>}, {transform_indices = @transform_3, window_bounds = array<i64: 1, 128>}, {transform_indices = @transform_4, window_bounds = array<i64: 16, 128>}]} {
    %c0_i32 = arith.constant 0 : i32
    %0 = arith.cmpi eq, %arg2, %c0_i32 : i32
    %1 = arith.extui %0 : i1 to i32
    %c0_i32_0 = arith.constant 0 : i32
    %2 = arith.cmpi ne, %1, %c0_i32_0 : i32
    scf.if %2 {
      %c0_17 = arith.constant 0 : index
      %c0_18 = arith.constant 0 : index
      %28 = vector.load %arg6[%c0_17, %c0_18] : memref<1x128xf32, #tpu.memory_space<vmem>>, vector<1x128xf32>
      %29 = vector.shape_cast %28 : vector<1x128xf32> to vector<1x128xf32>
      %30 = vector.broadcast %29 : vector<1x128xf32> to vector<16x128xf32>
      %c0_19 = arith.constant 0 : index
      %c0_20 = arith.constant 0 : index
      %31 = vector.load %arg7[%c0_19, %c0_20] : memref<16x128xf32, #tpu.memory_space<vmem>>, vector<16x128xf32>
      tpu.vector_store %arg7[%c0_19, %c0_20], %30 {strides = array<i32>} : memref<16x128xf32, #tpu.memory_space<vmem>>, vector<16x128xf32>,
    } else {
    }
    %c0 = arith.constant 0 : index
    %c0_1 = arith.constant 0 : index
    %c0_2 = arith.constant 0 : index
    %3 = vector.load %arg5[%c0, %c0_1, %c0_2] : memref<2x1x128xf32, #tpu.memory_space<vmem>>, vector<2x1x128xf32>
    %cst = arith.constant 1.000000e+00 : f32
    %4 = vector.broadcast %cst : f32 to vector<2x1x128xf32>
    %5 = arith.divf %4, %3 : vector<2x1x128xf32>
    %cst_3 = arith.constant 0.000000e+00 : f32
    %6 = vector.broadcast %cst_3 : f32 to vector<16x128xf32>
    %c0_4 = arith.constant 0 : index
    %c0_5 = arith.constant 0 : index
    %7 = vector.load %arg3[%c0_4, %c0_5] : memref<16x512xbf16, #tpu.memory_space<vmem>>, vector<16x256xbf16>
    %c0_6 = arith.constant 0 : index
    %c0_7 = arith.constant 0 : index
    %8 = vector.load %arg4[%c0_6, %c0_7] : memref<512x128xi8, #tpu.memory_space<vmem>>, vector<256x128xi8>
    %9 = arith.sitofp %8 : vector<256x128xi8> to vector<256x128xbf16>
    %cst_8 = arith.constant dense<0.000000e+00> : vector<16x128xf32>
    %10 = tpu.matmul %7, %9, %cst_8 {dimension_numbers = #tpu.dot_dimension_numbers<[1], [0], [0], [1], [0, 0, 1, 1], [], []>} : vector<16x256xbf16>, vector<256x128xbf16>, vector<16x128xf32> -> vector<16x128xf32>
    %11 = vector.extract_strided_slice %5 {offsets = [0, 0, 0], sizes = [1, 1, 128], strides = [1, 1, 1]} : vector<2x1x128xf32> to vector<1x1x128xf32>
    %12 = vector.shape_cast %11 : vector<1x1x128xf32> to vector<1x128xf32>
    %13 = vector.broadcast %12 : vector<1x128xf32> to vector<16x128xf32>
    %14 = arith.mulf %10, %13 : vector<16x128xf32>
    %15 = arith.addf %6, %14 : vector<16x128xf32>
    %c0_9 = arith.constant 0 : index
    %c256 = arith.constant 256 : index
    %16 = vector.load %arg3[%c0_9, %c256] : memref<16x512xbf16, #tpu.memory_space<vmem>>, vector<16x256xbf16>
    %c256_10 = arith.constant 256 : index
    %c0_11 = arith.constant 0 : index
    %17 = vector.load %arg4[%c256_10, %c0_11] : memref<512x128xi8, #tpu.memory_space<vmem>>, vector<256x128xi8>
    %18 = arith.sitofp %17 : vector<256x128xi8> to vector<256x128xbf16>
    %cst_12 = arith.constant dense<0.000000e+00> : vector<16x128xf32>
    %19 = tpu.matmul %16, %18, %cst_12 {dimension_numbers = #tpu.dot_dimension_numbers<[1], [0], [0], [1], [0, 0, 1, 1], [], []>} : vector<16x256xbf16>, vector<256x128xbf16>, vector<16x128xf32> -> vector<16x128xf32>
    %20 = vector.extract_strided_slice %5 {offsets = [1, 0, 0], sizes = [1, 1, 128], strides = [1, 1, 1]} : vector<2x1x128xf32> to vector<1x1x128xf32>
    %21 = vector.shape_cast %20 : vector<1x1x128xf32> to vector<1x128xf32>
    %22 = vector.broadcast %21 : vector<1x128xf32> to vector<16x128xf32>
    %23 = arith.mulf %19, %22 : vector<16x128xf32>
    %24 = arith.addf %15, %23 : vector<16x128xf32>
    %c0_13 = arith.constant 0 : index
    %c0_14 = arith.constant 0 : index
    %25 = vector.load %arg7[%c0_13, %c0_14] : memref<16x128xf32, #tpu.memory_space<vmem>>, vector<16x128xf32>
    %26 = arith.addf %25, %24 : vector<16x128xf32>
    %c0_15 = arith.constant 0 : index
    %c0_16 = arith.constant 0 : index
    %27 = vector.load %arg7[%c0_15, %c0_16] : memref<16x128xf32, #tpu.memory_space<vmem>>, vector<16x128xf32>
    tpu.vector_store %arg7[%c0_15, %c0_16], %26 {strides = array<i32>} : memref<16x128xf32, #tpu.memory_space<vmem>>, vector<16x128xf32>,
    return
  }
  func.func @transform_0(%arg0: i32, %arg1: i32, %arg2: i32) -> (i32, i32) {
    %c0_i32 = arith.constant 0 : i32
    return %arg0, %arg2 : i32, i32
  }
  func.func @transform_1(%arg0: i32, %arg1: i32, %arg2: i32) -> (i32, i32) {
    %c0_i32 = arith.constant 0 : i32
    return %arg2, %arg1 : i32, i32
  }
  func.func @transform_2(%arg0: i32, %arg1: i32, %arg2: i32) -> (i32, i32, i32) {
    %c0_i32 = arith.constant 0 : i32
    %c0_i32_0 = arith.constant 0 : i32
    return %arg2, %c0_i32, %arg1 : i32, i32, i32
  }
  func.func @transform_3(%arg0: i32, %arg1: i32, %arg2: i32) -> (i32, i32) {
    %c0_i32 = arith.constant 0 : i32
    %c0_i32_0 = arith.constant 0 : i32
    return %c0_i32, %arg1 : i32, i32
  }
  func.func @transform_4(%arg0: i32, %arg1: i32, %arg2: i32) -> (i32, i32) {
    %c0_i32 = arith.constant 0 : i32
    return %arg0, %arg1 : i32, i32
  }
}

</mosaic_0001>

<llo_original>
// kernel: tpu_custom_call.1
$region0: #{tpu_custom_call.1}
  #allocation0 [shape = 'u32[]', space=smem, size = 0x4, offset = 0x4, fixed_abs, tag = 'smem constant byte address 0x4 - core index']
  #allocation1 [shape = 'u32[144,128]{1,0:T(1,128)}', space=vmem, size = 0x12000, scoped, tag = 'internal scratch']
  %s0 = inlined_call_operand.hbm [shape: bf16[16,512], index: 0, kind: input, shape index: {}]
  %s1 = inlined_call_operand.hbm [shape: s8[512,128], index: 1, kind: input, shape index: {}]
  %s2 = inlined_call_operand.vmem [shape: f32[2,1,128], index: 2, kind: input, shape index: {}]
  %s3 = inlined_call_operand.vmem [shape: f32[1,128], index: 3, kind: input, shape index: {}]
  %s4 = inlined_call_operand.hbm [shape: f32[16,128], index: 4, kind: output, shape index: {}]
  %s5 = sld [smem:[#allocation0]]
  $region38: #{tpu_custom_call.1} parent=0
    _
  %s7 = ssub.s32 1, %s5
  %s8 = scalar_select 0, %s7, %s5
  $region1: #{tpu_custom_call.1} parent=0
    #allocation2 [shape = 'u8[16384]{0}', space=vmem, size = 0x4000, scoped, tag = 'input window, operand 0, single buffered']
    #allocation3 [shape = 's32[1]{0}', space=sflag, size = 0x4, scoped, tag = 'scoped memory for tpu_custom_call.1']
    #allocation4 [shape = 's32[1]{0}', space=sflag, size = 0x4, scoped, tag = 'scoped memory for tpu_custom_call.1']
    #allocation5 [shape = 'u8[65536]{0}', space=vmem, size = 0x10000, scoped, tag = 'input window, operand 1, single buffered']
    #allocation6 [shape = 's32[1]{0}', space=sflag, size = 0x4, scoped, tag = 'scoped memory for tpu_custom_call.1']
    #allocation7 [shape = 'u8[8192]{0}', space=vmem, size = 0x2000, scoped, tag = 'output window, operand 0, single buffered']
    %9 = vsyncpa [#allocation3], 0
    %10 = vsyncpa [#allocation6], 0
    %11 = vsyncpa [#allocation4], 0
    // Predicated region
    $region2: #{tpu_custom_call.1} parent=1 // pred_check
      _
    $region3: #{tpu_custom_call.1} parent=1 // pred_check_branch
      %13 = sbr.rel (0) target = $region5
    $region4: #{tpu_custom_call.1} parent=1 // pred_region
      %s15 = ssub.s32 512, 512
      %16 = vsyncadd [#allocation3], %s15
      %s17 = sshll.u32 [#allocation2], 4
      %s18 = int_to_ptr.vmem [resolvable:$true] %s17
      %23 = dma.hbm_to_vmem [thread:$0]  %s0, 512, %s18, [#allocation3], 256, 256, 16
    $region5: #{tpu_custom_call.1} parent=1 // pred_fallthru
      _
    // Predicated region
    $region6: #{tpu_custom_call.1} parent=1 // pred_check
      _
    $region7: #{tpu_custom_call.1} parent=1 // pred_check_branch
      %25 = sbr.rel (0) target = $region9
    $region8: #{tpu_custom_call.1} parent=1 // pred_region
      %s27 = ssub.s32 2048, 2048
      %28 = vsyncadd [#allocation6], %s27
      %s29 = sshll.u32 [#allocation5], 4
      %s30 = int_to_ptr.vmem [resolvable:$true] %s29
      %35 = dma.hbm_to_vmem [thread:$0]  %s1, 2048, %s30, [#allocation6], 128, 128, 8
    $region9: #{tpu_custom_call.1} parent=1 // pred_fallthru
      _
    // Predicated region
    $region10: #{tpu_custom_call.1} parent=1 // pred_check
      _
    $region11: #{tpu_custom_call.1} parent=1 // pred_check_branch
      %37 = sbr.rel (0) target = $region13
    $region12: #{tpu_custom_call.1} parent=1 // pred_region
      _
    $region13: #{tpu_custom_call.1} parent=1 // pred_fallthru
      _
    // Predicated region
    $region14: #{tpu_custom_call.1} parent=1 // pred_check
      _
    $region15: #{tpu_custom_call.1} parent=1 // pred_check_branch
      %39 = sbr.rel (0) target = $region17
    $region16: #{tpu_custom_call.1} parent=1 // pred_region
      _
    $region17: #{tpu_custom_call.1} parent=1 // pred_fallthru
      _
    // Predicated region
    $region18: #{tpu_custom_call.1} parent=1 // pred_check
      _
    $region19: #{tpu_custom_call.1} parent=1 // pred_check_branch
      %41 = sbr.rel (0) target = $region21
    $region20: #{tpu_custom_call.1} parent=1 // pred_region
      %42 = dma.done [#allocation3], 512
    $region21: #{tpu_custom_call.1} parent=1 // pred_fallthru
      _
    // Predicated region
    $region22: #{tpu_custom_call.1} parent=1 // pred_check
      _
    $region23: #{tpu_custom_call.1} parent=1 // pred_check_branch
      %44 = sbr.rel (0) target = $region25
    $region24: #{tpu_custom_call.1} parent=1 // pred_region
      %45 = dma.done [#allocation6], 2048
    $region25: #{tpu_custom_call.1} parent=1 // pred_fallthru
      _
    %p47 = scmp.eq.s32.totalorder 0, 0
    // Predicated region
    $region26: #{tpu_custom_call.1} parent=1 // pred_check
      %p48 = pneg %p47
    $region27: #{tpu_custom_call.1} parent=1 // pred_check_branch
      %50 = sbr.rel (%p48) target = $region29
    $region28: #{tpu_custom_call.1} parent=1 // pred_region
      %v51 = vld [vmem:[%s3] sm:$0x1]
      %v53 = vlaneseq
      %v54 = vshrl.u32 %v53, 7
      %v55 = vsub.s32 0, %v54
      %v56 = vrot.slane %v51, %v55
      %58 = vst [vmem:[#allocation7] sm:$0xff] %v56
      %59 = vst [vmem:[#allocation7 + $0x8] sm:$0xff] %v56
    $region29: #{tpu_custom_call.1} parent=1 // pred_fallthru
      _
    %v60 = vld [vmem:[%s2] sm:$0x1]
    %v61 = vld [vmem:[%s2 + $0x1] sm:$0x1]
    %v62 = vrcp.pop %v60
    %v63 = vmul.f32 1.0, %v62
    %v64 = vrcp.pop %v61
    %v65 = vmul.f32 1.0, %v64
    %v66 = vld [vmem:[#allocation2] sm:$0xff]
    %v67 = vld [vmem:[#allocation2 + $0x10] sm:$0xff]
    %v68 = vld [vmem:[#allocation5] sm:$0xff]
    %v69 = vld [vmem:[#allocation5 + $0x8] sm:$0xff]
    %v70 = vld [vmem:[#allocation5 + $0x10] sm:$0xff]
    %v71 = vld [vmem:[#allocation5 + $0x18] sm:$0xff]
    %v72 = vld [vmem:[#allocation5 + $0x20] sm:$0xff]
    %v73 = vld [vmem:[#allocation5 + $0x28] sm:$0xff]
    %v74 = vld [vmem:[#allocation5 + $0x30] sm:$0xff]
    %v75 = vld [vmem:[#allocation5 + $0x38] sm:$0xff]
    %v76 = vunpack.c.l.s8.bf16 %v68
    %v77 = vunpack.c.h.s8.bf16 %v68
    %v78 = vunpack.c.l.s8.bf16 %v69
    %v79 = vunpack.c.h.s8.bf16 %v69
    %v80 = vunpack.c.l.s8.bf16 %v70
    %v81 = vunpack.c.h.s8.bf16 %v70
    %v82 = vunpack.c.l.s8.bf16 %v71
    %v83 = vunpack.c.h.s8.bf16 %v71
    %v84 = vunpack.c.l.s8.bf16 %v72
    %v85 = vunpack.c.h.s8.bf16 %v72
    %v86 = vunpack.c.l.s8.bf16 %v73
    %v87 = vunpack.c.h.s8.bf16 %v73
    %v88 = vunpack.c.l.s8.bf16 %v74
    %v89 = vunpack.c.h.s8.bf16 %v74
    %v90 = vunpack.c.l.s8.bf16 %v75
    %v91 = vunpack.c.h.s8.bf16 %v75
    %v94 = vunpack.c.l.b16 %v66
    %v95 = vunpack.c.h.b16 %v66
    %v96 = vunpack.c.l.b16 %v67
    %v97 = vunpack.c.h.b16 %v67
    %v98 = vpack.c.b16 %v96, %v94
    %v99 = vpack.c.b16 %v97, %v95
    %102 = vmatprep.subr.bf16.mxu0 0
    %103 = vmatpush1.bf16.msra.mxu0 %v76
    %104 = vmatprep.subr.bf16.mxu0 0
    %105 = vmatpush1.bf16.msra.mxu0 %v77
    %106 = vmatprep.subr.bf16.mxu0 0
    %107 = vmatpush1.bf16.msra.mxu0 %v78
    %108 = vmatprep.subr.bf16.mxu0 0
    %109 = vmatpush1.bf16.msra.mxu0 %v79
    %110 = vmatprep.subr.bf16.mxu0 0
    %111 = vmatpush1.bf16.msra.mxu0 %v80
    %112 = vmatprep.subr.bf16.mxu0 0
    %113 = vmatpush1.bf16.msra.mxu0 %v81
    %114 = vmatprep.subr.bf16.mxu0 0
    %115 = vmatpush1.bf16.msra.mxu0 %v82
    %116 = vmatprep.subr.bf16.mxu0 0
    %117 = vmatpush1.bf16.msra.mxu0 %v83
    %118 = vmatprep.subr.bf16.mxu0 0
    %119 = vmatpush1.bf16.msra.mxu0 %v84
    %120 = vmatprep.subr.bf16.mxu0 0
    %121 = vmatpush1.bf16.msra.mxu0 %v85
    %122 = vmatprep.subr.bf16.mxu0 0
    %123 = vmatpush1.bf16.msra.mxu0 %v86
    %124 = vmatprep.subr.bf16.mxu0 0
    %125 = vmatpush1.bf16.msra.mxu0 %v87
    %126 = vmatprep.subr.bf16.mxu0 0
    %127 = vmatpush1.bf16.msra.mxu0 %v88
    %128 = vmatprep.subr.bf16.mxu0 0
    %129 = vmatpush1.bf16.msra.mxu0 %v89
    %130 = vmatprep.subr.bf16.mxu0 0
    %131 = vmatpush1.bf16.msra.mxu0 %v90
    %132 = vmatprep.subr.bf16.mxu0 0
    %133 = vmatpush1.bf16.msra.mxu0 %v91
    %134 = vmatprep.mubr.bf16.mxu0 %v99
    %135 = vmatmul.mubr.bf16.gmra.mrb[0].mxu0 %v98
    %v136 = vpop.f32.mrb[0].mxu0
    %v137 = vadd.f32 0.0, %v136
    %v138 = vpop.f32.mrb[0].mxu0
    %v139 = vpop.f32.mrb[0].mxu0
    %v140 = vadd.f32 0.0, %v139
    %v141 = vpop.f32.mrb[0].mxu0
    %142 = vdwg.mxu0
    %v144 = vlaneseq
    %v145 = vshrl.u32 %v144, 7
    %v146 = vsub.s32 0, %v145
    %v147 = vrot.slane %v63, %v146
    %v149 = vmul.f32 %v137, %v147
    %v150 = vmul.f32 %v140, %v147
    %v151 = vadd.f32 %v149, 0.0
    %v152 = vadd.f32 %v150, 0.0
    %v153 = vld [vmem:[#allocation2 + $0x8] sm:$0xff]
    %v154 = vld [vmem:[#allocation2 + $0x18] sm:$0xff]
    %v155 = vld [vmem:[#allocation5 + $0x40] sm:$0xff]
    %v156 = vld [vmem:[#allocation5 + $0x48] sm:$0xff]
    %v157 = vld [vmem:[#allocation5 + $0x50] sm:$0xff]
    %v158 = vld [vmem:[#allocation5 + $0x58] sm:$0xff]
    %v159 = vld [vmem:[#allocation5 + $0x60] sm:$0xff]
    %v160 = vld [vmem:[#allocation5 + $0x68] sm:$0xff]
    %v161 = vld [vmem:[#allocation5 + $0x70] sm:$0xff]
    %v162 = vld [vmem:[#allocation5 + $0x78] sm:$0xff]
    %v163 = vunpack.c.l.s8.bf16 %v155
    %v164 = vunpack.c.h.s8.bf16 %v155
    %v165 = vunpack.c.l.s8.bf16 %v156
    %v166 = vunpack.c.h.s8.bf16 %v156
    %v167 = vunpack.c.l.s8.bf16 %v157
    %v168 = vunpack.c.h.s8.bf16 %v157
    %v169 = vunpack.c.l.s8.bf16 %v158
    %v170 = vunpack.c.h.s8.bf16 %v158
    %v171 = vunpack.c.l.s8.bf16 %v159
    %v172 = vunpack.c.h.s8.bf16 %v159
    %v173 = vunpack.c.l.s8.bf16 %v160
    %v174 = vunpack.c.h.s8.bf16 %v160
    %v175 = vunpack.c.l.s8.bf16 %v161
    %v176 = vunpack.c.h.s8.bf16 %v161
    %v177 = vunpack.c.l.s8.bf16 %v162
    %v178 = vunpack.c.h.s8.bf16 %v162
    %v181 = vunpack.c.l.b16 %v153
    %v182 = vunpack.c.h.b16 %v153
    %v183 = vunpack.c.l.b16 %v154
    %v184 = vunpack.c.h.b16 %v154
    %v185 = vpack.c.b16 %v183, %v181
    %v186 = vpack.c.b16 %v184, %v182
    %189 = vmatprep.subr.bf16.mxu0 0
    %190 = vmatpush1.bf16.msra.mxu0 %v163
    %191 = vmatprep.subr.bf16.mxu0 0
    %192 = vmatpush1.bf16.msra.mxu0 %v164
    %193 = vmatprep.subr.bf16.mxu0 0
    %194 = vmatpush1.bf16.msra.mxu0 %v165
    %195 = vmatprep.subr.bf16.mxu0 0
    %196 = vmatpush1.bf16.msra.mxu0 %v166
    %197 = vmatprep.subr.bf16.mxu0 0
    %198 = vmatpush1.bf16.msra.mxu0 %v167
    %199 = vmatprep.subr.bf16.mxu0 0
    %200 = vmatpush1.bf16.msra.mxu0 %v168
    %201 = vmatprep.subr.bf16.mxu0 0
    %202 = vmatpush1.bf16.msra.mxu0 %v169
    %203 = vmatprep.subr.bf16.mxu0 0
    %204 = vmatpush1.bf16.msra.mxu0 %v170
    %205 = vmatprep.subr.bf16.mxu0 0
    %206 = vmatpush1.bf16.msra.mxu0 %v171
    %207 = vmatprep.subr.bf16.mxu0 0
    %208 = vmatpush1.bf16.msra.mxu0 %v172
    %209 = vmatprep.subr.bf16.mxu0 0
    %210 = vmatpush1.bf16.msra.mxu0 %v173
    %211 = vmatprep.subr.bf16.mxu0 0
    %212 = vmatpush1.bf16.msra.mxu0 %v174
    %213 = vmatprep.subr.bf16.mxu0 0
    %214 = vmatpush1.bf16.msra.mxu0 %v175
    %215 = vmatprep.subr.bf16.mxu0 0
    %216 = vmatpush1.bf16.msra.mxu0 %v176
    %217 = vmatprep.subr.bf16.mxu0 0
    %218 = vmatpush1.bf16.msra.mxu0 %v177
    %219 = vmatprep.subr.bf16.mxu0 0
    %220 = vmatpush1.bf16.msra.mxu0 %v178
    %221 = vmatprep.mubr.bf16.mxu0 %v186
    %222 = vmatmul.mubr.bf16.gmra.mrb[0].mxu0 %v185
    %v223 = vpop.f32.mrb[0].mxu0
    %v224 = vadd.f32 0.0, %v223
    %v225 = vpop.f32.mrb[0].mxu0
    %v226 = vpop.f32.mrb[0].mxu0
    %v227 = vadd.f32 0.0, %v226
    %v228 = vpop.f32.mrb[0].mxu0
    %229 = vdwg.mxu0
    %v231 = vlaneseq
    %v232 = vshrl.u32 %v231, 7
    %v233 = vsub.s32 0, %v232
    %v234 = vrot.slane %v65, %v233
    %v236 = vmul.f32 %v224, %v234
    %v237 = vmul.f32 %v227, %v234
    %v238 = vadd.f32 %v151, %v236
    %v239 = vadd.f32 %v152, %v237
    %v240 = vld [vmem:[#allocation7] sm:$0xff]
    %v241 = vld [vmem:[#allocation7 + $0x8] sm:$0xff]
    %v242 = vadd.f32 %v240, %v238
    %v243 = vadd.f32 %v241, %v239
    %244 = vst [vmem:[#allocation7] sm:$0xff] %v242
    %245 = vst [vmem:[#allocation7 + $0x8] sm:$0xff] %v243
    // Predicated region
    $region30: #{tpu_custom_call.1} parent=1 // pred_check
      _
    $region31: #{tpu_custom_call.1} parent=1 // pred_check_branch
      %247 = sbr.rel (0) target = $region33
    $region32: #{tpu_custom_call.1} parent=1 // pred_region
      %s249 = ssub.s32 256, 256
      %250 = vsyncadd [#allocation4], %s249
      %s251 = sshll.u32 [#allocation7], 4
      %s252 = int_to_ptr.vmem [resolvable:$true] %s251
      %257 = dma.vmem_to_hbm [thread:$0]  %s252, 256, %s4, [#allocation4], 128, 128, 8
    $region33: #{tpu_custom_call.1} parent=1 // pred_fallthru
      _
    // Predicated region
    $region34: #{tpu_custom_call.1} parent=1 // pred_check
      _
    $region35: #{tpu_custom_call.1} parent=1 // pred_check_branch
      %259 = sbr.rel (0) target = $region37
    $region36: #{tpu_custom_call.1} parent=1 // pred_region
      %260 = dma.done [#allocation4], 256
    $region37: #{tpu_custom_call.1} parent=1 // pred_fallthru
      _
    %261 = vsyncpa [#allocation3], 1
    %262 = vsyncpa [#allocation6], 1
    %263 = vsyncpa [#allocation4], 1

</llo_original>
